<compile_context>
chip_gen: v5e
topology: v5e:2x2
jax: 0.10.0
libtpu: 0.0.40
codegen_flags: <defaults>
</compile_context>

<pallas_src>
import functools

import numpy as np
import jax
import jax.numpy as jnp
from jax import lax
from jax.experimental import pallas as pl
from jax.experimental.pallas import tpu as pltpu

EPS = 1e-5


def _divisors(n):
    ds = set()
    i = 1
    while i * i <= n:
        if n % i == 0:
            ds.add(i)
            ds.add(n // i)
        i += 1
    return sorted(ds)


def _round_up(x, m):
    return ((x + m - 1) // m) * m


# ---------------------------------------------------------------------------
# Kernel 1: 2x2 pool-sums (via 0/1 pooling matrix on the MXU) + per-row BN
#           statistics.  One independent tile of rows per grid step.
#   x tile    : (bt, L)   L = k*2*W   (k row-pairs of one channel plane)
#   P         : (L, P2)   P2 = k*W2   (static 0/1 pooling matrix)
#   psum tile : (bt, P2)  pooled sums, already NCHW-ordered
#   stat tile : (bt, 2)   [row sum, row sum-of-squares]
# ---------------------------------------------------------------------------
def _pool_stats_kernel(x_ref, p_ref, psum_ref, stat_ref):
    x = x_ref[...]                                                    # (bt, L)
    psum_ref[...] = jnp.dot(x, p_ref[...],
                            preferred_element_type=jnp.float32)      # (bt, P2)
    stat_ref[:, 0:1] = jnp.sum(x, axis=1, keepdims=True)             # (bt, 1)
    stat_ref[:, 1:2] = jnp.sum(x * x, axis=1, keepdims=True)         # (bt, 1)


# ---------------------------------------------------------------------------
# Kernel 2: fused BN-affine + 0.25*avg-pool + 1x1 conv as one matmul with the
#           spatial dim on lanes (lane-dense output, NCHW order).
#   psum tile : (1, C, sp)    w_fold : (Cout, C)    bias : (Cout, 1)
#   out tile  : (1, Cout, sp)
# ---------------------------------------------------------------------------
def _conv_kernel(p_ref, w_ref, b_ref, o_ref):
    y = jnp.dot(w_ref[...], p_ref[0],
                preferred_element_type=jnp.float32)                  # (Cout, sp)
    o_ref[0] = y + b_ref[...]


def transition_forward(x_nchw, params, *, vmem_budget_bytes=12 * 1024 * 1024):
    """Pallas implementation of Transition.forward.  x_nchw: (N, Cin, H, W) f32."""
    gamma, beta, w_oihw = params
    N, C, H, W = x_nchw.shape
    assert H % 2 == 0 and W % 2 == 0, "AvgPool2d(2,2) path assumes even spatial dims"
    Cout = w_oihw.shape[0]
    H2, W2 = H // 2, W // 2
    SP = H2 * W2
    M = N * H * W

    # ---- pass-1 geometry: group k output rows per flattened input row so that
    #      the input lane dim L = k*2*W is >= 128 (lane-dense vld / VPU) ----
    k = H2
    for d in _divisors(H2):
        if d * 2 * W >= 128:
            k = d
            break
    Hk = H2 // k                 # input-row groups per channel plane
    L = k * 2 * W                # pass-1 input lane dim
    P2 = k * W2                  # pass-1 output lane dim (pooled sums of the group)
    R = N * C * Hk               # pass-1 rows

    # Static 0/1 pooling matrix: pooled_row = x_row @ P  (MXU, no lane shuffles).
    P_np = np.zeros((L, P2), np.float32)
    for j in range(k):
        for w2 in range(W2):
            col = j * W2 + w2
            for r in (0, 1):
                for s in (0, 1):
                    P_np[j * 2 * W + r * W + 2 * w2 + s, col] = 1.0
    P = jnp.asarray(P_np)

    # ---- adaptive row tile: VMEM budget (lane-padded, double-buffered) and a
    #      minimum number of grid steps for megacore sharding + pipelining ----
    Lp, P2p = _round_up(L, 128), _round_up(P2, 128)
    per_row_bytes = 2 * 4 * (Lp + P2p + 128)          # in + out + stats, double-buffered
    cap = max(8, vmem_budget_bytes // per_row_bytes)
    if R >= 64:
        cap = min(cap, max(8, R // 8))                # keep >= ~8 grid steps
    divs = _divisors(R)
    cands8 = [d for d in divs if d <= cap and d % 8 == 0]
    cands = [d for d in divs if d <= cap]
    bt = max(cands8) if cands8 else max(cands)
    grid1 = R // bt                                   # exact -> no ragged tiles / masking

    # ---- Pallas pass 1: pooled sums + BN statistics, x read from HBM once ----
    x2 = x_nchw.reshape(R, L)                         # pure reshape of NCHW (free)
    psum2, stats = pl.pallas_call(
        _pool_stats_kernel,
        out_shape=(jax.ShapeDtypeStruct((R, P2), jnp.float32),
                   jax.ShapeDtypeStruct((R, 2), jnp.float32)),
        grid=(grid1,),
        in_specs=[pl.BlockSpec((bt, L), lambda i: (i, 0)),
                  pl.BlockSpec((L, P2), lambda i: (0, 0))],
        out_specs=(pl.BlockSpec((bt, P2), lambda i: (i, 0)),
                   pl.BlockSpec((bt, 2), lambda i: (i, 0))),
        compiler_params=pltpu.CompilerParams(
            dimension_semantics=("parallel",),        # fully independent tiles
            vmem_limit_bytes=32 * 1024 * 1024),
        cost_estimate=pl.CostEstimate(
            flops=2 * R * L * P2 + 3 * R * L,
            transcendentals=0,
            bytes_accessed=4 * (R * L + R * P2 + 2 * R + L * P2)),
    )(x2, P)

    # ---- glue (parameter-sized only): BN stats -> scale/shift, fold into conv ----
    st = stats.reshape(N, C, Hk, 2)
    mean = jnp.sum(st[..., 0], axis=(0, 2)) / M                     # (C,)
    var = jnp.maximum(jnp.sum(st[..., 1], axis=(0, 2)) / M - mean * mean, 0.0)
    scale = gamma * lax.rsqrt(var + EPS)                            # (C,)
    shift = beta - mean * scale                                     # (C,)
    w2d = w_oihw[:, :, 0, 0]                                        # (Cout, C)
    w_fold = (0.25 * w2d) * scale[None, :]                          # BN scale + pool 1/4
    bias = (w2d @ shift).reshape(Cout, 1)                           # BN shift through conv

    # ---- Pallas pass 2: out[n] = w_fold @ psum[n] + bias, spatial on lanes ----
    psum3 = psum2.reshape(N, C, SP)                                 # pure reshape (free)
    sp_t = SP
    if SP > 2048:
        sp_divs = [d for d in _divisors(SP) if d % 128 == 0 and d <= 2048]
        if sp_divs:
            sp_t = max(sp_divs)

    out3 = pl.pallas_call(
        _conv_kernel,
        out_shape=jax.ShapeDtypeStruct((N, Cout, SP), jnp.float32),
        grid=(N, SP // sp_t),
        in_specs=[pl.BlockSpec((1, C, sp_t), lambda n, s: (n, 0, s)),
                  pl.BlockSpec((Cout, C), lambda n, s: (0, 0)),
                  pl.BlockSpec((Cout, 1), lambda n, s: (0, 0))],
        out_specs=pl.BlockSpec((1, Cout, sp_t), lambda n, s: (n, 0, s)),
        compiler_params=pltpu.CompilerParams(
            dimension_semantics=("parallel", "parallel"),
            vmem_limit_bytes=32 * 1024 * 1024),
        cost_estimate=pl.CostEstimate(
            flops=2 * N * Cout * C * SP,
            transcendentals=0,
            bytes_accessed=4 * (N * C * SP + Cout * C + Cout + N * Cout * SP)),
    )(psum3, w_fold, bias)

    return out3.reshape(N, Cout, H2, W2)                            # NCHW, free reshape


# ---------------------------------------------------------------------------
# Pure-JAX reference (mirrors the PyTorch module exactly, NCHW) for checking.
# ---------------------------------------------------------------------------
def transition_reference(x, params):
    gamma, beta, w_oihw = params
    m = jnp.mean(x, axis=(0, 2, 3), keepdims=True)
    v = jnp.mean(jnp.square(x - m), axis=(0, 2, 3), keepdims=True)
    xn = (x - m) * lax.rsqrt(v + EPS) * gamma.reshape(1, -1, 1, 1) + beta.reshape(1, -1, 1, 1)
    y = lax.conv_general_dilated(xn, w_oihw, (1, 1), 'VALID',
                                 dimension_numbers=('NCHW', 'OIHW', 'NCHW'))
    n, co, h, w = y.shape
    return y.reshape(n, co, h // 2, 2, w // 2, 2).mean(axis=(3, 5))


if __name__ == "__main__":
    # Small shapes consistent with the module: in_channels=16, out_channels=8, 16x16 spatial.
    N, Cin, H, W = 2, 16, 16, 16
    Cout = 8

    key = jax.random.PRNGKey(0)
    ks = jax.random.split(key, 4)
    x = jax.random.normal(ks[0], (N, Cin, H, W), dtype=jnp.float32)
    gamma = 1.0 + 0.1 * jax.random.normal(ks[1], (Cin,), dtype=jnp.float32)
    beta = 0.1 * jax.random.normal(ks[2], (Cin,), dtype=jnp.float32)
    w = 0.1 * jax.random.normal(ks[3], (Cout, Cin, 1, 1), dtype=jnp.float32)  # OIHW, bias=False
    params = (gamma, beta, w)

    fwd = jax.jit(transition_forward)
    out = jax.block_until_ready(fwd(x, params))
    ref = jax.block_until_ready(transition_reference(x, params))

    assert out.shape == (N, Cout, H // 2, W // 2), out.shape
    err = float(np.max(np.abs(np.asarray(out) - np.asarray(ref))))
    assert np.allclose(np.asarray(out), np.asarray(ref), atol=1e-4, rtol=1e-4), err

    print("KERNEL_OK")
</pallas_src>

<mosaic_0001>
module attributes {stable_mosaic.version = 11 : i64} {
  func.func @_pool_stats_kernel(%arg0: i32, %arg1: memref<8x128xf32, #tpu.memory_space<vmem>>, %arg2: memref<128x32xf32, #tpu.memory_space<vmem>>, %arg3: memref<8x32xf32, #tpu.memory_space<vmem>>, %arg4: memref<8x2xf32, #tpu.memory_space<vmem>>) attributes {dimension_semantics = [#tpu.dimension_semantics<parallel>], iteration_bounds = array<i64: 8>, scalar_prefetch = 0 : i64, scratch_operands = 0 : i64, tpu.core_type = #tpu.core_type<tc>, window_params = [{transform_indices = @transform_0, window_bounds = array<i64: 8, 128>}, {pipeline_mode = #tpu.pipeline_mode<synchronous>, transform_indices = @transform_1, window_bounds = array<i64: 128, 32>}, {transform_indices = @transform_2, window_bounds = array<i64: 8, 32>}, {transform_indices = @transform_3, window_bounds = array<i64: 8, 2>}]} {
    %c0 = arith.constant 0 : index
    %c0_0 = arith.constant 0 : index
    %0 = vector.load %arg1[%c0, %c0_0] : memref<8x128xf32, #tpu.memory_space<vmem>>, vector<8x128xf32>
    %c0_1 = arith.constant 0 : index
    %c0_2 = arith.constant 0 : index
    %1 = vector.load %arg2[%c0_1, %c0_2] : memref<128x32xf32, #tpu.memory_space<vmem>>, vector<128x32xf32>
    %cst = arith.constant dense<0.000000e+00> : vector<8x32xf32>
    %2 = tpu.matmul %0, %1, %cst {dimension_numbers = #tpu.dot_dimension_numbers<[1], [0], [0], [1], [0, 0, 1, 1], [], []>} : vector<8x128xf32>, vector<128x32xf32>, vector<8x32xf32> -> vector<8x32xf32>
    %c0_3 = arith.constant 0 : index
    %c0_4 = arith.constant 0 : index
    %3 = vector.load %arg3[%c0_3, %c0_4] : memref<8x32xf32, #tpu.memory_space<vmem>>, vector<8x32xf32>
    tpu.vector_store %arg3[%c0_3, %c0_4], %2 {strides = array<i32>} : memref<8x32xf32, #tpu.memory_space<vmem>>, vector<8x32xf32>,
    %cst_5 = arith.constant dense<0.000000e+00> : vector<8xf32>
    %4 = vector.multi_reduction <add>, %0, %cst_5 [1] : vector<8x128xf32> to vector<8xf32>
    %5 = vector.shape_cast %4 : vector<8xf32> to vector<8x1xf32>
    %c0_6 = arith.constant 0 : index
    %c0_7 = arith.constant 0 : index
    %6 = vector.load %arg4[%c0_6, %c0_7] : memref<8x2xf32, #tpu.memory_space<vmem>>, vector<8x1xf32>
    tpu.vector_store %arg4[%c0_6, %c0_7], %5 {strides = array<i32>} : memref<8x2xf32, #tpu.memory_space<vmem>>, vector<8x1xf32>,
    %7 = arith.mulf %0, %0 : vector<8x128xf32>
    %cst_8 = arith.constant dense<0.000000e+00> : vector<8xf32>
    %8 = vector.multi_reduction <add>, %7, %cst_8 [1] : vector<8x128xf32> to vector<8xf32>
    %9 = vector.shape_cast %8 : vector<8xf32> to vector<8x1xf32>
    %c0_9 = arith.constant 0 : index
    %c1 = arith.constant 1 : index
    %10 = vector.load %arg4[%c0_9, %c1] : memref<8x2xf32, #tpu.memory_space<vmem>>, vector<8x1xf32>
    tpu.vector_store %arg4[%c0_9, %c1], %9 {strides = array<i32>} : memref<8x2xf32, #tpu.memory_space<vmem>>, vector<8x1xf32>,
    return
  }
  func.func @transform_0(%arg0: i32) -> (i32, i32) {
    %c0_i32 = arith.constant 0 : i32
    %c0_i32_0 = arith.constant 0 : i32
    return %arg0, %c0_i32 : i32, i32
  }
  func.func @transform_1(%arg0: i32) -> (i32, i32) {
    %c0_i32 = arith.constant 0 : i32
    %c0_i32_0 = arith.constant 0 : i32
    %c0_i32_1 = arith.constant 0 : i32
    return %c0_i32, %c0_i32_0 : i32, i32
  }
  func.func @transform_2(%arg0: i32) -> (i32, i32) {
    %c0_i32 = arith.constant 0 : i32
    %c0_i32_0 = arith.constant 0 : i32
    return %arg0, %c0_i32 : i32, i32
  }
  func.func @transform_3(%arg0: i32) -> (i32, i32) {
    %c0_i32 = arith.constant 0 : i32
    %c0_i32_0 = arith.constant 0 : i32
    return %arg0, %c0_i32 : i32, i32
  }
}

module attributes {stable_mosaic.version = 11 : i64} {
  func.func @_conv_kernel(%arg0: i32, %arg1: i32, %arg2: memref<1x16x64xf32, #tpu.memory_space<vmem>>, %arg3: memref<8x16xf32, #tpu.memory_space<vmem>>, %arg4: memref<8x1xf32, #tpu.memory_space<vmem>>, %arg5: memref<1x8x64xf32, #tpu.memory_space<vmem>>) attributes {dimension_semantics = [#tpu.dimension_semantics<parallel>, #tpu.dimension_semantics<parallel>], iteration_bounds = array<i64: 2, 1>, scalar_prefetch = 0 : i64, scratch_operands = 0 : i64, tpu.core_type = #tpu.core_type<tc>, window_params = [{transform_indices = @transform_0, window_bounds = array<i64: 1, 16, 64>}, {pipeline_mode = #tpu.pipeline_mode<synchronous>, transform_indices = @transform_1, window_bounds = array<i64: 8, 16>}, {pipeline_mode = #tpu.pipeline_mode<synchronous>, transform_indices = @transform_2, window_bounds = array<i64: 8, 1>}, {transform_indices = @transform_3, window_bounds = array<i64: 1, 8, 64>}]} {
    %c0 = arith.constant 0 : index
    %c0_0 = arith.constant 0 : index
    %0 = vector.load %arg3[%c0, %c0_0] : memref<8x16xf32, #tpu.memory_space<vmem>>, vector<8x16xf32>
    %c0_1 = arith.constant 0 : index
    %c0_2 = arith.constant 0 : index
    %c0_3 = arith.constant 0 : index
    %1 = vector.load %arg2[%c0_1, %c0_2, %c0_3] : memref<1x16x64xf32, #tpu.memory_space<vmem>>, vector<1x16x64xf32>
    %2 = vector.shape_cast %1 : vector<1x16x64xf32> to vector<16x64xf32>
    %cst = arith.constant dense<0.000000e+00> : vector<8x64xf32>
    %3 = tpu.matmul %0, %2, %cst {dimension_numbers = #tpu.dot_dimension_numbers<[1], [0], [0], [1], [0, 0, 1, 1], [], []>} : vector<8x16xf32>, vector<16x64xf32>, vector<8x64xf32> -> vector<8x64xf32>
    %c0_4 = arith.constant 0 : index
    %c0_5 = arith.constant 0 : index
    %4 = vector.load %arg4[%c0_4, %c0_5] : memref<8x1xf32, #tpu.memory_space<vmem>>, vector<8x1xf32>
    %5 = vector.broadcast %4 : vector<8x1xf32> to vector<8x64xf32>
    %6 = arith.addf %3, %5 : vector<8x64xf32>
    %c0_6 = arith.constant 0 : index
    %c0_7 = arith.constant 0 : index
    %c0_8 = arith.constant 0 : index
    %7 = vector.load %arg5[%c0_6, %c0_7, %c0_8] : memref<1x8x64xf32, #tpu.memory_space<vmem>>, vector<1x8x64xf32>
    %8 = vector.shape_cast %7 : vector<1x8x64xf32> to vector<8x64xf32>
    %9 = vector.shape_cast %6 : vector<8x64xf32> to vector<1x8x64xf32>
    tpu.vector_store %arg5[%c0_6, %c0_7, %c0_8], %9 {strides = array<i32>} : memref<1x8x64xf32, #tpu.memory_space<vmem>>, vector<1x8x64xf32>,
    return
  }
  func.func @transform_0(%arg0: i32, %arg1: i32) -> (i32, i32, i32) {
    %c0_i32 = arith.constant 0 : i32
    %c0_i32_0 = arith.constant 0 : i32
    return %arg0, %c0_i32, %arg1 : i32, i32, i32
  }
  func.func @transform_1(%arg0: i32, %arg1: i32) -> (i32, i32) {
    %c0_i32 = arith.constant 0 : i32
    %c0_i32_0 = arith.constant 0 : i32
    %c0_i32_1 = arith.constant 0 : i32
    return %c0_i32, %c0_i32_0 : i32, i32
  }
  func.func @transform_2(%arg0: i32, %arg1: i32) -> (i32, i32) {
    %c0_i32 = arith.constant 0 : i32
    %c0_i32_0 = arith.constant 0 : i32
    %c0_i32_1 = arith.constant 0 : i32
    return %c0_i32, %c0_i32_0 : i32, i32
  }
  func.func @transform_3(%arg0: i32, %arg1: i32) -> (i32, i32, i32) {
    %c0_i32 = arith.constant 0 : i32
    %c0_i32_0 = arith.constant 0 : i32
    return %arg0, %c0_i32, %arg1 : i32, i32, i32
  }
}

</mosaic_0001>

<llo_original>
// kernel: transition_forward.2
$region0: #{transition_forward.2}
  #allocation0 [shape = 'u32[]', space=smem, size = 0x4, offset = 0x4, fixed_abs, tag = 'smem constant byte address 0x4 - core index']
  #allocation1 [shape = 'u32[72,128]{1,0:T(1,128)}', space=vmem, size = 0x9000, scoped, tag = 'internal scratch']
  %s0 = inlined_call_operand.vmem [shape: f32[64,128], index: 0, kind: input, shape index: {}]
  %s1 = inlined_call_operand.vmem [shape: f32[128,32], index: 1, kind: input, shape index: {}]
  %s2 = inlined_call_operand.vmem [shape: f32[64,32], index: 2, kind: output, shape index: {0}]
  %s3 = inlined_call_operand.vmem [shape: f32[64,2], index: 3, kind: output, shape index: {1}]
  %4 = xla_tuple %s2, %s3
  %s5 = sld [smem:[#allocation0]]
  $region49: #{transition_forward.2} parent=0
    _
  %s7 = ssub.s32 1, %s5
  %s8 = scalar_select 0, %s7, %s5
  loop: start=0, step=1, limit=10
  $region2: #{transition_forward.2} parent=0 // loop_pre_header
    _
  $region3: #{transition_forward.2} parent=0 // loop_header
    %s10 = sphi 0, %s14
    %p11 = scmp.ge.s32.totalorder %s10, 10
    %s20 = sphi 0, %s22
    %s23 = sphi 0, %s20
    %s24 = sphi 0, %s23
    %s40 = sphi 0, %s24
    %s44 = sphi 0, %s44
    %s46 = sphi 0, %s44
    %s47 = sphi 0, %s46
    %s61 = sphi 0, %s47
    %s67 = sphi 0, %s69
    %s70 = sphi 0, %s67
    %s71 = sphi 0, %s70
    %s87 = sphi 0, %s71
    %s93 = sphi 0, %s95
    %s96 = sphi 0, %s93
    %s97 = sphi 0, %s96
    %s113 = sphi 0, %s97
  $region4: #{transition_forward.2} parent=0 // loop_header_branch
    %13 = sbr.rel (%p11) target = $region8
  $region5: #{transition_forward.2} parent=0 // loop_body
    %s15 = ssub.s32 %s10, 1
    %s16 = ssub.s32 %s10, 2
    %s17 = sadd.s32 %s10, 1
    %s18 = ssub.s32 %s10, %s17
    %p19 = scmp.eq.s32.totalorder %s18, 0
    %s21 = sadd.s32 %s20, 1
    %s22 = scalar_select %p19, %s20, %s21
    %p25 = pneg %p19
    %p26 = scmp.eq.s32.totalorder %s10, 7
    %p27 = por %p25, %p26
    %p28 = scmp.ne.s32.totalorder %s20, %s23
    %p29 = scmp.eq.s32.totalorder %s10, 0
    %p30 = por %p28, %p29
    %p31 = scmp.ne.s32.totalorder %s20, %s23
    %p32 = scmp.eq.s32.totalorder %s15, 7
    %p33 = por %p31, %p32
    %p34 = scmp.ne.s32.totalorder %s23, %s24
    %p35 = scmp.eq.s32.totalorder %s15, 0
    %p36 = por %p34, %p35
    %p37 = scmp.ne.s32.totalorder %s23, %s24
    %p38 = scmp.eq.s32.totalorder %s16, 7
    %p39 = por %p37, %p38
    %p41 = scmp.ne.s32.totalorder %s24, %s40
    %p42 = scmp.eq.s32.totalorder %s16, 0
    %p43 = por %p41, %p42
    %s45 = sadd.s32 %s44, 1
    %p48 = scmp.eq.s32.totalorder %s10, 7
    %p49 = scmp.ne.s32.totalorder %s44, %s46
    %p50 = scmp.eq.s32.totalorder %s10, 0
    %p51 = por %p49, %p50
    %p52 = scmp.ne.s32.totalorder %s44, %s46
    %p53 = scmp.eq.s32.totalorder %s15, 7
    %p54 = por %p52, %p53
    %p55 = scmp.ne.s32.totalorder %s46, %s47
    %p56 = scmp.eq.s32.totalorder %s15, 0
    %p57 = por %p55, %p56
    %p58 = scmp.ne.s32.totalorder %s46, %s47
    %p59 = scmp.eq.s32.totalorder %s16, 7
    %p60 = por %p58, %p59
    %p62 = scmp.ne.s32.totalorder %s47, %s61
    %p63 = scmp.eq.s32.totalorder %s16, 0
    %p64 = por %p62, %p63
    %s65 = ssub.s32 %s10, %s17
    %p66 = scmp.eq.s32.totalorder %s65, 0
    %s68 = sadd.s32 %s67, 1
    %s69 = scalar_select %p66, %s67, %s68
    %p72 = pneg %p66
    %p73 = scmp.eq.s32.totalorder %s10, 7
    %p74 = por %p72, %p73
    %p75 = scmp.ne.s32.totalorder %s67, %s70
    %p76 = scmp.eq.s32.totalorder %s10, 0
    %p77 = por %p75, %p76
    %p78 = scmp.ne.s32.totalorder %s67, %s70
    %p79 = scmp.eq.s32.totalorder %s15, 7
    %p80 = por %p78, %p79
    %p81 = scmp.ne.s32.totalorder %s70, %s71
    %p82 = scmp.eq.s32.totalorder %s15, 0
    %p83 = por %p81, %p82
    %p84 = scmp.ne.s32.totalorder %s70, %s71
    %p85 = scmp.eq.s32.totalorder %s16, 7
    %p86 = por %p84, %p85
    %p88 = scmp.ne.s32.totalorder %s71, %s87
    %p89 = scmp.eq.s32.totalorder %s16, 0
    %p90 = por %p88, %p89
    %s91 = ssub.s32 %s10, %s17
    %p92 = scmp.eq.s32.totalorder %s91, 0
    %s94 = sadd.s32 %s93, 1
    %s95 = scalar_select %p92, %s93, %s94
    %p98 = pneg %p92
    %p99 = scmp.eq.s32.totalorder %s10, 7
    %p100 = por %p98, %p99
    %p101 = scmp.ne.s32.totalorder %s93, %s96
    %p102 = scmp.eq.s32.totalorder %s10, 0
    %p103 = por %p101, %p102
    %p104 = scmp.ne.s32.totalorder %s93, %s96
    %p105 = scmp.eq.s32.totalorder %s15, 7
    %p106 = por %p104, %p105
    %p107 = scmp.ne.s32.totalorder %s96, %s97
    %p108 = scmp.eq.s32.totalorder %s15, 0
    %p109 = por %p107, %p108
    %p110 = scmp.ne.s32.totalorder %s96, %s97
    %p111 = scmp.eq.s32.totalorder %s16, 7
    %p112 = por %p110, %p111
    %p114 = scmp.ne.s32.totalorder %s97, %s113
    %p115 = scmp.eq.s32.totalorder %s16, 0
    %p116 = por %p114, %p115
    %p117 = scmp.le.s32.totalorder 1, %s10
    %p118 = scmp.lt.s32.totalorder %s10, 9
    %p119 = pnand %p117, %p118
    %p120 = pneg %p119
    // Predicated region
    $region9: #{transition_forward.2} parent=5 // pred_check
      _
    $region10: #{transition_forward.2} parent=5 // pred_check_branch
      %122 = sbr.rel (%p119) target = $region12
    $region11: #{transition_forward.2} parent=5 // pred_region
      %s123 = ssub.s32 %s10, 1
      // Predicated region
      $region13: #{transition_forward.2} parent=11 // pred_check
        %p124 = pneg %p57
      $region14: #{transition_forward.2} parent=11 // pred_check_branch
        %126 = sbr.rel (%p124) target = $region16
      $region15: #{transition_forward.2} parent=11 // pred_region
        _
      $region16: #{transition_forward.2} parent=11 // pred_fallthru
        _
    $region12: #{transition_forward.2} parent=5 // pred_fallthru
      _
    %p127 = scmp.lt.s32.totalorder %s10, 8
    // Predicated region
    $region17: #{transition_forward.2} parent=5 // pred_check
      %p128 = pneg %p127
    $region18: #{transition_forward.2} parent=5 // pred_check_branch
      %130 = sbr.rel (%p128) target = $region20
    $region19: #{transition_forward.2} parent=5 // pred_region
      // Predicated region
      $region21: #{transition_forward.2} parent=19 // pred_check
        %p131 = pneg %p30
      $region22: #{transition_forward.2} parent=19 // pred_check_branch
        %133 = sbr.rel (%p131) target = $region24
      $region23: #{transition_forward.2} parent=19 // pred_region
        %p134 = scmp.lt.s32.totalorder %s10, 7
        %s135 = scalar_select %p134, %s10, 7
        %s136 = smul.addr %s135, 8
        %s137 = scalar_lea.vmem %s0, %s136
      $region24: #{transition_forward.2} parent=19 // pred_fallthru
        _
    $region20: #{transition_forward.2} parent=5 // pred_fallthru
      _
    %p138 = scmp.le.s32.totalorder 1, %s10
    %p139 = scmp.lt.s32.totalorder %s10, 9
    %p140 = pnand %p138, %p139
    %p141 = pneg %p140
    // Predicated region
    $region25: #{transition_forward.2} parent=5 // pred_check
      _
    $region26: #{transition_forward.2} parent=5 // pred_check_branch
      %143 = sbr.rel (%p140) target = $region28
    $region27: #{transition_forward.2} parent=5 // pred_region
      %s144 = ssub.s32 %s10, 1
      %p145 = scmp.lt.s32.totalorder %s15, 7
      %s146 = scalar_select %p145, %s15, 7
      %s147 = smul.addr %s146, 8
      %s148 = scalar_lea.vmem %s0, %s147
      %p149 = pneg %p36
      %p150 = pneg %p33
      %p151 = pneg %p57
      %p152 = pneg %p54
      %p153 = pneg %p83
      %p154 = pneg %p80
      %p155 = scmp.lt.s32.totalorder %s15, 7
      %s156 = scalar_select %p155, %s15, 7
      %s157 = smul.addr %s156, 8
      %s158 = scalar_lea.vmem %s2, %s157
      %p159 = pneg %p109
      %p160 = pneg %p106
      %p161 = scmp.lt.s32.totalorder %s15, 7
      %s162 = scalar_select %p161, %s15, 7
      %s163 = smul.addr %s162, 8
      %s164 = scalar_lea.vmem %s3, %s163
      %p165 = scmp.lt.s32.totalorder %s15, 7
      %s166 = scalar_select %p165, %s15, 7
      %s167 = smul.addr %s166, 8
      %s168 = scalar_lea.vmem %s0, %s167
      %p169 = scmp.lt.s32.totalorder %s15, 7
      %s170 = scalar_select %p169, %s15, 7
      %s171 = smul.addr %s170, 8
      %s172 = scalar_lea.vmem %s2, %s171
      %p173 = scmp.lt.s32.totalorder %s15, 7
      %s174 = scalar_select %p173, %s15, 7
      %s175 = smul.addr %s174, 8
      %s176 = scalar_lea.vmem %s3, %s175
      %v177 = vld [vmem:[%s168] sm:$0xff]
      %v178 = vld [vmem:[%s1] sm:$0xff]
      %v179 = vld [vmem:[%s1 + $0x8] sm:$0xff]
      %v180 = vld [vmem:[%s1 + $0x10] sm:$0xff]
      %v181 = vld [vmem:[%s1 + $0x18] sm:$0xff]
      %v182 = vld [vmem:[%s1 + $0x20] sm:$0xff]
      %v183 = vld [vmem:[%s1 + $0x28] sm:$0xff]
      %v184 = vld [vmem:[%s1 + $0x30] sm:$0xff]
      %v185 = vld [vmem:[%s1 + $0x38] sm:$0xff]
      %v186 = vld [vmem:[%s1 + $0x40] sm:$0xff]
      %v187 = vld [vmem:[%s1 + $0x48] sm:$0xff]
      %v188 = vld [vmem:[%s1 + $0x50] sm:$0xff]
      %v189 = vld [vmem:[%s1 + $0x58] sm:$0xff]
      %v190 = vld [vmem:[%s1 + $0x60] sm:$0xff]
      %v191 = vld [vmem:[%s1 + $0x68] sm:$0xff]
      %v192 = vld [vmem:[%s1 + $0x70] sm:$0xff]
      %v193 = vld [vmem:[%s1 + $0x78] sm:$0xff]
      %194 = vmatpush.msra.mxu0 %v193
      %195 = vmatpush.msra.mxu0 %v192
      %196 = vmatpush.msra.mxu0 %v191
      %197 = vmatpush.msra.mxu0 %v190
      %198 = vmatpush.msra.mxu0 %v189
      %199 = vmatpush.msra.mxu0 %v188
      %200 = vmatpush.msra.mxu0 %v187
      %201 = vmatpush.msra.mxu0 %v186
      %202 = vmatpush.msra.mxu0 %v185
      %203 = vmatpush.msra.mxu0 %v184
      %204 = vmatpush.msra.mxu0 %v183
      %205 = vmatpush.msra.mxu0 %v182
      %206 = vmatpush.msra.mxu0 %v181
      %207 = vmatpush.msra.mxu0 %v180
      %208 = vmatpush.msra.mxu0 %v179
      %209 = vmatpush.msra.mxu0 %v178
      %210 = vmatmul.f32.gmra.mxu0 %v177
      %v211 = vpop.f32.mrf.mxu0
      %v212 = vadd.f32 0.0, %v211
      %213 = vdwg.mxu0
      %vm214 = vcmask 261120
      %215 = vst.msk [vmem:[%s172] sm:$0xff] %vm214, %v212
      %216 = vadd.xlane.f32.xlu0 %v177
      %v217 = vpop.xlane.xlu0 %216
      %vm218 = vcmask 7168
      %219 = vst.msk [vmem:[%s176] sm:$0xff] %vm218, %v217
      %v220 = vmul.f32 %v177, %v177
      %221 = vadd.xlane.f32.xlu0 %v220
      %v222 = vpop.xlane.xlu0 %221
      %vm223 = vcmask 15368
      %224 = vst.msk [vmem:[%s176] sm:$0xff] %vm223, %v222
      %p225 = scmp.lt.s32.totalorder %s15, 7
      %s226 = scalar_select %p225, %s15, 7
      %s227 = smul.addr %s226, 8
      %s228 = scalar_lea.vmem %s2, %s227
      %p229 = scmp.lt.s32.totalorder %s15, 7
      %s230 = scalar_select %p229, %s15, 7
      %s231 = smul.addr %s230, 8
      %s232 = scalar_lea.vmem %s3, %s231
      // Predicated region
      $region29: #{transition_forward.2} parent=27 // pred_check
        %p233 = pneg %p80
      $region30: #{transition_forward.2} parent=27 // pred_check_branch
        %235 = sbr.rel (%p233) target = $region32
      $region31: #{transition_forward.2} parent=27 // pred_region
        _
      $region32: #{transition_forward.2} parent=27 // pred_fallthru
        _
      // Predicated region
      $region33: #{transition_forward.2} parent=27 // pred_check
        %p236 = pneg %p106
      $region34: #{transition_forward.2} parent=27 // pred_check_branch
        %238 = sbr.rel (%p236) target = $region36
      $region35: #{transition_forward.2} parent=27 // pred_region
        _
      $region36: #{transition_forward.2} parent=27 // pred_fallthru
        _
    $region28: #{transition_forward.2} parent=5 // pred_fallthru
      _
    %p239 = scmp.le.s32.totalorder 2, %s10
    // Predicated region
    $region37: #{transition_forward.2} parent=5 // pred_check
      %p240 = pneg %p239
    $region38: #{transition_forward.2} parent=5 // pred_check_branch
      %242 = sbr.rel (%p240) target = $region40
    $region39: #{transition_forward.2} parent=5 // pred_region
      %s243 = ssub.s32 %s10, 2
      // Predicated region
      $region41: #{transition_forward.2} parent=39 // pred_check
        %p244 = pneg %p86
      $region42: #{transition_forward.2} parent=39 // pred_check_branch
        %246 = sbr.rel (%p244) target = $region44
      $region43: #{transition_forward.2} parent=39 // pred_region
        %p247 = scmp.lt.s32.totalorder %s16, 7
        %s248 = scalar_select %p247, %s16, 7
        %s249 = smul.addr %s248, 8
        %s250 = scalar_lea.vmem %s2, %s249
      $region44: #{transition_forward.2} parent=39 // pred_fallthru
        _
      // Predicated region
      $region45: #{transition_forward.2} parent=39 // pred_check
        %p251 = pneg %p112
      $region46: #{transition_forward.2} parent=39 // pred_check_branch
        %253 = sbr.rel (%p251) target = $region48
      $region47: #{transition_forward.2} parent=39 // pred_region
        %p254 = scmp.lt.s32.totalorder %s16, 7
        %s255 = scalar_select %p254, %s16, 7
        %s256 = smul.addr %s255, 8
        %s257 = scalar_lea.vmem %s3, %s256
      $region48: #{transition_forward.2} parent=39 // pred_fallthru
        _
    $region40: #{transition_forward.2} parent=5 // pred_fallthru
      _
  $region6: #{transition_forward.2} parent=0 // loop_footer
    %s14 = sadd.s32 1, %s10
  $region7: #{transition_forward.2} parent=0 // loop_footer_branch
    %9 = sbr.rel target = $region3
  $region8: #{transition_forward.2} parent=0 // loop_exit
    _

// kernel: transition_forward.3
$region0: #{transition_forward.3}
  #allocation0 [shape = 'u32[]', space=smem, size = 0x4, offset = 0x4, fixed_abs, tag = 'smem constant byte address 0x4 - core index']
  #allocation1 [shape = 'u32[72,128]{1,0:T(1,128)}', space=vmem, size = 0x9000, scoped, tag = 'internal scratch']
  %s0 = inlined_call_operand.vmem [shape: f32[2,16,64], index: 0, kind: input, shape index: {}]
  %s1 = inlined_call_operand.vmem [shape: f32[8,16], index: 1, kind: input, shape index: {}]
  %s2 = inlined_call_operand.vmem [shape: f32[8,1], index: 2, kind: input, shape index: {}]
  %s3 = inlined_call_operand.vmem [shape: f32[2,8,64], index: 3, kind: output, shape index: {}]
  %s4 = sld [smem:[#allocation0]]
  $region45: #{transition_forward.3} parent=0
    _
  %s6 = ssub.s32 1, %s4
  %s7 = scalar_select 0, %s6, %s4
  loop: start=0, step=1, limit=4
  $region2: #{transition_forward.3} parent=0 // loop_pre_header
    _
  $region3: #{transition_forward.3} parent=0 // loop_header
    %s9 = sphi 0, %s13
    %p10 = scmp.ge.s32.totalorder %s9, 4
    %s16 = sphi 0, %s28
    %s17 = sphi 0, %s24
    %s18 = sphi 0, %s16
    %s19 = sphi 0, %s17
    %s20 = sphi 0, %s18
    %s21 = sphi 0, %s19
    %s33 = sphi 0, %s35
    %s36 = sphi 0, %s33
    %s37 = sphi 0, %s36
    %s53 = sphi 0, %s37
    %s57 = sphi 0, %s57
    %s59 = sphi 0, %s57
    %s60 = sphi 0, %s59
    %s74 = sphi 0, %s60
    %s78 = sphi 0, %s78
    %s80 = sphi 0, %s78
    %s81 = sphi 0, %s80
    %s95 = sphi 0, %s81
    %s103 = sphi 0, %s105
    %s106 = sphi 0, %s103
    %s107 = sphi 0, %s106
    %s123 = sphi 0, %s107
  $region4: #{transition_forward.3} parent=0 // loop_header_branch
    %12 = sbr.rel (%p10) target = $region8
  $region5: #{transition_forward.3} parent=0 // loop_body
    %s14 = ssub.s32 %s9, 1
    %s15 = ssub.s32 %s9, 2
    %s22 = sadd.s32 1, %s17
    %p23 = scmp.ge.s32.totalorder %s22, 1
    %s24 = scalar_select %p23, 0, %s22
    %s25 = sadd.s32 1, %s16
    %s26 = scalar_select %p23, %s25, %s16
    %p27 = scmp.ge.s32.totalorder %s26, 2
    %s28 = scalar_select %p27, 0, %s26
    %s29 = ssub.s32 %s16, %s28
    %s30 = ssub.s32 %s17, %s24
    %s31 = sor.u32 %s29, %s30
    %p32 = scmp.eq.s32.totalorder %s31, 0
    %s34 = sadd.s32 %s33, 1
    %s35 = scalar_select %p32, %s33, %s34
    %p38 = pneg %p32
    %p39 = scmp.eq.s32.totalorder %s9, 1
    %p40 = por %p38, %p39
    %p41 = scmp.ne.s32.totalorder %s33, %s36
    %p42 = scmp.eq.s32.totalorder %s9, 0
    %p43 = por %p41, %p42
    %p44 = scmp.ne.s32.totalorder %s33, %s36
    %p45 = scmp.eq.s32.totalorder %s14, 1
    %p46 = por %p44, %p45
    %p47 = scmp.ne.s32.totalorder %s36, %s37
    %p48 = scmp.eq.s32.totalorder %s14, 0
    %p49 = por %p47, %p48
    %p50 = scmp.ne.s32.totalorder %s36, %s37
    %p51 = scmp.eq.s32.totalorder %s15, 1
    %p52 = por %p50, %p51
    %p54 = scmp.ne.s32.totalorder %s37, %s53
    %p55 = scmp.eq.s32.totalorder %s15, 0
    %p56 = por %p54, %p55
    %s58 = sadd.s32 %s57, 1
    %p61 = scmp.eq.s32.totalorder %s9, 1
    %p62 = scmp.ne.s32.totalorder %s57, %s59
    %p63 = scmp.eq.s32.totalorder %s9, 0
    %p64 = por %p62, %p63
    %p65 = scmp.ne.s32.totalorder %s57, %s59
    %p66 = scmp.eq.s32.totalorder %s14, 1
    %p67 = por %p65, %p66
    %p68 = scmp.ne.s32.totalorder %s59, %s60
    %p69 = scmp.eq.s32.totalorder %s14, 0
    %p70 = por %p68, %p69
    %p71 = scmp.ne.s32.totalorder %s59, %s60
    %p72 = scmp.eq.s32.totalorder %s15, 1
    %p73 = por %p71, %p72
    %p75 = scmp.ne.s32.totalorder %s60, %s74
    %p76 = scmp.eq.s32.totalorder %s15, 0
    %p77 = por %p75, %p76
    %s79 = sadd.s32 %s78, 1
    %p82 = scmp.eq.s32.totalorder %s9, 1
    %p83 = scmp.ne.s32.totalorder %s78, %s80
    %p84 = scmp.eq.s32.totalorder %s9, 0
    %p85 = por %p83, %p84
    %p86 = scmp.ne.s32.totalorder %s78, %s80
    %p87 = scmp.eq.s32.totalorder %s14, 1
    %p88 = por %p86, %p87
    %p89 = scmp.ne.s32.totalorder %s80, %s81
    %p90 = scmp.eq.s32.totalorder %s14, 0
    %p91 = por %p89, %p90
    %p92 = scmp.ne.s32.totalorder %s80, %s81
    %p93 = scmp.eq.s32.totalorder %s15, 1
    %p94 = por %p92, %p93
    %p96 = scmp.ne.s32.totalorder %s81, %s95
    %p97 = scmp.eq.s32.totalorder %s15, 0
    %p98 = por %p96, %p97
    %s99 = ssub.s32 %s16, %s28
    %s100 = ssub.s32 %s17, %s24
    %s101 = sor.u32 %s99, %s100
    %p102 = scmp.eq.s32.totalorder %s101, 0
    %s104 = sadd.s32 %s103, 1
    %s105 = scalar_select %p102, %s103, %s104
    %p108 = pneg %p102
    %p109 = scmp.eq.s32.totalorder %s9, 1
    %p110 = por %p108, %p109
    %p111 = scmp.ne.s32.totalorder %s103, %s106
    %p112 = scmp.eq.s32.totalorder %s9, 0
    %p113 = por %p111, %p112
    %p114 = scmp.ne.s32.totalorder %s103, %s106
    %p115 = scmp.eq.s32.totalorder %s14, 1
    %p116 = por %p114, %p115
    %p117 = scmp.ne.s32.totalorder %s106, %s107
    %p118 = scmp.eq.s32.totalorder %s14, 0
    %p119 = por %p117, %p118
    %p120 = scmp.ne.s32.totalorder %s106, %s107
    %p121 = scmp.eq.s32.totalorder %s15, 1
    %p122 = por %p120, %p121
    %p124 = scmp.ne.s32.totalorder %s107, %s123
    %p125 = scmp.eq.s32.totalorder %s15, 0
    %p126 = por %p124, %p125
    %p127 = scmp.le.s32.totalorder 1, %s9
    %p128 = scmp.lt.s32.totalorder %s9, 3
    %p129 = pnand %p127, %p128
    %p130 = pneg %p129
    // Predicated region
    $region9: #{transition_forward.3} parent=5 // pred_check
      _
    $region10: #{transition_forward.3} parent=5 // pred_check_branch
      %132 = sbr.rel (%p129) target = $region12
    $region11: #{transition_forward.3} parent=5 // pred_region
      %s133 = ssub.s32 %s9, 1
      // Predicated region
      $region13: #{transition_forward.3} parent=11 // pred_check
        %p134 = pneg %p70
      $region14: #{transition_forward.3} parent=11 // pred_check_branch
        %136 = sbr.rel (%p134) target = $region16
      $region15: #{transition_forward.3} parent=11 // pred_region
        _
      $region16: #{transition_forward.3} parent=11 // pred_fallthru
        _
      // Predicated region
      $region17: #{transition_forward.3} parent=11 // pred_check
        %p137 = pneg %p91
      $region18: #{transition_forward.3} parent=11 // pred_check_branch
        %139 = sbr.rel (%p137) target = $region20
      $region19: #{transition_forward.3} parent=11 // pred_region
        _
      $region20: #{transition_forward.3} parent=11 // pred_fallthru
        _
    $region12: #{transition_forward.3} parent=5 // pred_fallthru
      _
    %p140 = scmp.lt.s32.totalorder %s9, 2
    // Predicated region
    $region21: #{transition_forward.3} parent=5 // pred_check
      %p141 = pneg %p140
    $region22: #{transition_forward.3} parent=5 // pred_check_branch
      %143 = sbr.rel (%p141) target = $region24
    $region23: #{transition_forward.3} parent=5 // pred_region
      // Predicated region
      $region25: #{transition_forward.3} parent=23 // pred_check
        %p144 = pneg %p43
      $region26: #{transition_forward.3} parent=23 // pred_check_branch
        %146 = sbr.rel (%p144) target = $region28
      $region27: #{transition_forward.3} parent=23 // pred_region
        %p147 = scmp.lt.s32.totalorder %s16, 1
        %s148 = scalar_select %p147, %s16, 1
        %p149 = scmp.lt.s32.totalorder %s17, 0
        %s150 = scalar_select %p149, %s17, 0
        %s151 = smul.addr %s148, 2
        %s152 = sadd.s32 %s150, %s151
        %s153 = smul.addr %s152, 8
        %s154 = scalar_lea.vmem %s0, %s153
      $region28: #{transition_forward.3} parent=23 // pred_fallthru
        _
    $region24: #{transition_forward.3} parent=5 // pred_fallthru
      _
    %p155 = scmp.le.s32.totalorder 1, %s9
    %p156 = scmp.lt.s32.totalorder %s9, 3
    %p157 = pnand %p155, %p156
    %p158 = pneg %p157
    // Predicated region
    $region29: #{transition_forward.3} parent=5 // pred_check
      _
    $region30: #{transition_forward.3} parent=5 // pred_check_branch
      %160 = sbr.rel (%p157) target = $region32
    $region31: #{transition_forward.3} parent=5 // pred_region
      %s161 = ssub.s32 %s9, 1
      %p162 = scmp.lt.s32.totalorder %s18, 1
      %s163 = scalar_select %p162, %s18, 1
      %p164 = scmp.lt.s32.totalorder %s19, 0
      %s165 = scalar_select %p164, %s19, 0
      %s166 = smul.addr %s163, 2
      %s167 = sadd.s32 %s165, %s166
      %s168 = smul.addr %s167, 8
      %s169 = scalar_lea.vmem %s0, %s168
      %p170 = pneg %p49
      %p171 = pneg %p46
      %p172 = pneg %p70
      %p173 = pneg %p67
      %p174 = pneg %p91
      %p175 = pneg %p88
      %p176 = pneg %p119
      %p177 = pneg %p116
      %p178 = scmp.lt.s32.totalorder %s18, 1
      %s179 = scalar_select %p178, %s18, 1
      %p180 = scmp.lt.s32.totalorder %s19, 0
      %s181 = scalar_select %p180, %s19, 0
      %s182 = sadd.s32 %s181, %s179
      %s183 = smul.addr %s182, 8
      %s184 = scalar_lea.vmem %s3, %s183
      %p185 = scmp.lt.s32.totalorder %s18, 1
      %s186 = scalar_select %p185, %s18, 1
      %p187 = scmp.lt.s32.totalorder %s19, 0
      %s188 = scalar_select %p187, %s19, 0
      %s189 = smul.addr %s186, 2
      %s190 = sadd.s32 %s188, %s189
      %s191 = smul.addr %s190, 8
      %s192 = scalar_lea.vmem %s0, %s191
      %p193 = scmp.lt.s32.totalorder %s18, 1
      %s194 = scalar_select %p193, %s18, 1
      %p195 = scmp.lt.s32.totalorder %s19, 0
      %s196 = scalar_select %p195, %s19, 0
      %s197 = sadd.s32 %s196, %s194
      %s198 = smul.addr %s197, 8
      %s199 = scalar_lea.vmem %s3, %s198
      %v200 = vld [vmem:[%s1] sm:$0xff]
      %v201 = vld [vmem:[%s192] sm:$0xff]
      %v202 = vld [vmem:[%s192 + $0x8] sm:$0xff]
      %v203 = vld [vmem:[%s2] sm:$0xff]
      %205 = vset.pattern.permute.xlu0 0
      %206 = vperm.xlu0 %205, %v203
      %v207 = vpop.permute.xlu0 %206
      %vm209 = vcmask 130048
      %v211 = vsel %vm209, %v200, 0
      %213 = vmatpush.msra.mxu0 0.0
      %214 = vmatpush.msra.mxu0 0.0
      %215 = vmatpush.msra.mxu0 0.0
      %216 = vmatpush.msra.mxu0 0.0
      %217 = vmatpush.msra.mxu0 0.0
      %218 = vmatpush.msra.mxu0 0.0
      %219 = vmatpush.msra.mxu0 0.0
      %220 = vmatpush.msra.mxu0 0.0
      %221 = vmatpush.msra.mxu0 0.0
      %222 = vmatpush.msra.mxu0 0.0
      %223 = vmatpush.msra.mxu0 0.0
      %224 = vmatpush.msra.mxu0 0.0
      %225 = vmatpush.msra.mxu0 0.0
      %226 = vmatpush.msra.mxu0 0.0
      %227 = vmatpush.msra.mxu0 %v202
      %228 = vmatpush.msra.mxu0 %v201
      %229 = vmatmul.f32.gmra.mxu0 %v211
      %v230 = vpop.f32.mrf.mxu0
      %v231 = vadd.f32 %v207, %v230
      %232 = vdwg.mxu0
      %vm233 = vcmask 523264
      %234 = vst.msk [vmem:[%s199] sm:$0xff] %vm233, %v231
      %p235 = scmp.lt.s32.totalorder %s18, 1
      %s236 = scalar_select %p235, %s18, 1
      %p237 = scmp.lt.s32.totalorder %s19, 0
      %s238 = scalar_select %p237, %s19, 0
      %s239 = sadd.s32 %s238, %s236
      %s240 = smul.addr %s239, 8
      %s241 = scalar_lea.vmem %s3, %s240
      // Predicated region
      $region33: #{transition_forward.3} parent=31 // pred_check
        %p242 = pneg %p116
      $region34: #{transition_forward.3} parent=31 // pred_check_branch
        %244 = sbr.rel (%p242) target = $region36
      $region35: #{transition_forward.3} parent=31 // pred_region
        _
      $region36: #{transition_forward.3} parent=31 // pred_fallthru
        _
    $region32: #{transition_forward.3} parent=5 // pred_fallthru
      _
    %p245 = scmp.le.s32.totalorder 2, %s9
    // Predicated region
    $region37: #{transition_forward.3} parent=5 // pred_check
      %p246 = pneg %p245
    $region38: #{transition_forward.3} parent=5 // pred_check_branch
      %248 = sbr.rel (%p246) target = $region40
    $region39: #{transition_forward.3} parent=5 // pred_region
      %s249 = ssub.s32 %s9, 2
      // Predicated region
      $region41: #{transition_forward.3} parent=39 // pred_check
        %p250 = pneg %p122
      $region42: #{transition_forward.3} parent=39 // pred_check_branch
        %252 = sbr.rel (%p250) target = $region44
      $region43: #{transition_forward.3} parent=39 // pred_region
        %p253 = scmp.lt.s32.totalorder %s20, 1
        %s254 = scalar_select %p253, %s20, 1
        %p255 = scmp.lt.s32.totalorder %s21, 0
        %s256 = scalar_select %p255, %s21, 0
        %s257 = sadd.s32 %s256, %s254
        %s258 = smul.addr %s257, 8
        %s259 = scalar_lea.vmem %s3, %s258
      $region44: #{transition_forward.3} parent=39 // pred_fallthru
        _
    $region40: #{transition_forward.3} parent=5 // pred_fallthru
      _
  $region6: #{transition_forward.3} parent=0 // loop_footer
    %s13 = sadd.s32 1, %s9
  $region7: #{transition_forward.3} parent=0 // loop_footer_branch
    %8 = sbr.rel target = $region3
  $region8: #{transition_forward.3} parent=0 // loop_exit
    _

</llo_original>
